<compile_context>
chip_gen: v6e
topology: v6e:2x2x1
jax: 0.10.0
libtpu: 0.0.40
codegen_flags: <defaults>
</compile_context>

<pallas_src>
import numpy as np
import jax
import jax.numpy as jnp
from jax import lax
from jax.experimental import pallas as pl
from jax.experimental.pallas import tpu as pltpu

BN_EPS = 1e-5
TAPS_PER_GROUP = 2      # 2 taps -> 256-lane MXU contraction (v6e/v7x); use 1 on v5e.


def cpad(c):
    """Round a channel count up to a multiple of 128 (TPU lane width)."""
    return -(-c // 128) * 128


def align16(n):
    """Round up to a multiple of 16 (bf16 sublane packing)."""
    return -(-n // 16) * 16


# ----------------------------------------------------------------------------
# In-kernel helper: grouped-tap conv accumulation
# ----------------------------------------------------------------------------
def _grouped_conv(buf, w_read, *, padA, pad, dil, L_out, G, NG):
    """buf: (Lbuf, Cin_p) bf16 halo buffer; returns (L_out, Cout_p) f32.

    Tap k of the conv reads rows [padA - pad + k*dil, +L_out).  Taps are grouped
    G at a time (lane-concatenated) and accumulated across groups in f32, so the
    live patch is only (L_out, G*Cin_p) instead of (L_out, K*Cin_p)."""
    def tap(k):
        return buf[pl.ds(padA - pad + k * dil, L_out), :]

    def patch(g):
        taps = [tap(g * G + t) for t in range(G)]
        return taps[0] if G == 1 else jnp.concatenate(taps, axis=-1)

    acc = jnp.dot(patch(0), w_read(0), preferred_element_type=jnp.float32)
    for g in range(1, NG):
        acc = acc + jnp.dot(patch(g), w_read(g), preferred_element_type=jnp.float32)
    return acc


# ----------------------------------------------------------------------------
# Prolog: wrapper-side im2col (real mel channels) + single matmul kernel
# ----------------------------------------------------------------------------
def _prolog_kernel(x_ref, w_ref, b_ref, o_ref):
    acc = jnp.dot(x_ref[0], w_ref[...], preferred_element_type=jnp.float32)
    acc = jnp.maximum(acc + b_ref[...], 0.0)
    o_ref[0] = acc.astype(o_ref.dtype)


def matmul_bias_relu_pallas(x, w, b):
    """x: (N, L, Cin_p) bf16; w: (Cin_p, Cout_p) bf16; b: (1, Cout_p) f32."""
    N, L, Cin_p = x.shape
    Cout_p = w.shape[1]
    return pl.pallas_call(
        _prolog_kernel,
        out_shape=jax.ShapeDtypeStruct((N, L, Cout_p), jnp.bfloat16),
        grid=(N,),
        in_specs=[
            pl.BlockSpec((1, L, Cin_p), lambda n: (n, 0, 0)),
            pl.BlockSpec((Cin_p, Cout_p), lambda n: (0, 0)),
            pl.BlockSpec((1, Cout_p), lambda n: (0, 0)),
        ],
        out_specs=pl.BlockSpec((1, L, Cout_p), lambda n: (n, 0, 0)),
        compiler_params=pltpu.CompilerParams(dimension_semantics=("parallel",)),
    )(x, w, b)


def prolog_im2col(x, K, stride):
    """x: (N, L, Cin_real) bf16 -> (N, Lout, K*Cin_real) bf16 (stride-2 patches)."""
    N, L, Cin = x.shape
    pad = K // 2
    Lout = (L + 2 * pad - (K - 1) - 1) // stride + 1
    xp = jnp.pad(x, ((0, 0), (pad, pad), (0, 0)))
    cols = [xp[:, k:k + stride * Lout:stride, :] for k in range(K)]
    return jnp.concatenate(cols, axis=-1)


# ----------------------------------------------------------------------------
# Fully fused JasperBlock
#   r x (conv+BN+ReLU) -> first_half conv+BN (+ 1x1 residual conv+BN) -> ReLU
# Intermediates live in bf16 VMEM halo buffers (zeroed borders = conv padding).
# ----------------------------------------------------------------------------
def _make_block_kernel(r, pad, padA, pad_r, L, Cin_p, G, NG):
    def kernel(x_ref, wsub_ref, bsub_ref, wfh_ref, wres_ref, bfr_ref, o_ref,
               x_buf, buf_a, buf_b):
        # Zero only the halo border rows (interior is fully overwritten every
        # step).  Done each grid step -- a handful of rows, negligible vst
        # traffic -- so it stays correct when the batch axis is sharded across
        # TensorCores (per-core scratch; program_id==0 may never run on a core).
        for buf in (x_buf, buf_a, buf_b):
            if padA:
                buf[pl.ds(0, padA), :] = jnp.zeros((padA, Cin_p), jnp.bfloat16)
            if pad_r:
                buf[pl.ds(padA + L, pad_r), :] = jnp.zeros((pad_r, Cin_p),
                                                           jnp.bfloat16)
        # Stage the (unpadded) input tile; interior starts at a 16-row-aligned
        # offset so the residual 1x1 read and this store are sublane-aligned.
        x_buf[pl.ds(padA, L), :] = x_ref[0]

        def conv_relu(src, w_read, bias):
            acc = _grouped_conv(src, w_read, padA=padA, pad=pad, dil=1,
                                L_out=L, G=G, NG=NG)
            return jnp.maximum(acc + bias, 0.0)

        # r sub-blocks, resident in VMEM (bf16 ping-pong)
        src = x_buf
        pp = (buf_a, buf_b)
        for i in range(r):
            acc = conv_relu(src, lambda g, i=i: wsub_ref[i, g], bsub_ref[i])
            dst = pp[i % 2]
            dst[pl.ds(padA, L), :] = acc.astype(jnp.bfloat16)
            src = dst

        # first-half conv on the last intermediate + fused 1x1 residual conv
        acc = _grouped_conv(src, lambda g: wfh_ref[g], padA=padA, pad=pad,
                            dil=1, L_out=L, G=G, NG=NG)
        acc = acc + jnp.dot(x_buf[pl.ds(padA, L), :], wres_ref[...],
                            preferred_element_type=jnp.float32)
        acc = jnp.maximum(acc + bfr_ref[...], 0.0)
        o_ref[0] = acc.astype(o_ref.dtype)

    return kernel


def jasper_block_pallas(x, blk):
    """x: (N, L, Cin_p) bf16 (UNPADDED along L); blk: prepared weights/biases."""
    N, L, Cin_p = x.shape
    K, G, NG = blk["K"], blk["G"], blk["NG"]
    pad = K // 2
    padA = align16(pad)
    pad_r = pad + (NG * G - K)          # right halo incl. phantom zero taps
    Lbuf = padA + L + pad_r
    r = blk["sub_w"].shape[0]
    GC = G * Cin_p
    Cout_p = blk["fh_w"].shape[-1]

    kernel = _make_block_kernel(r, pad, padA, pad_r, L, Cin_p, G, NG)
    return pl.pallas_call(
        kernel,
        out_shape=jax.ShapeDtypeStruct((N, L, Cout_p), jnp.bfloat16),
        grid=(N,),
        in_specs=[
            pl.BlockSpec((1, L, Cin_p), lambda n: (n, 0, 0)),
            pl.BlockSpec((r, NG, GC, Cin_p), lambda n: (0, 0, 0, 0)),
            pl.BlockSpec((r, 1, Cin_p), lambda n: (0, 0, 0)),
            pl.BlockSpec((NG, GC, Cout_p), lambda n: (0, 0, 0)),
            pl.BlockSpec((Cin_p, Cout_p), lambda n: (0, 0)),
            pl.BlockSpec((1, Cout_p), lambda n: (0, 0)),
        ],
        out_specs=pl.BlockSpec((1, L, Cout_p), lambda n: (n, 0, 0)),
        scratch_shapes=[pltpu.VMEM((Lbuf, Cin_p), jnp.bfloat16)] * 3,
        compiler_params=pltpu.CompilerParams(dimension_semantics=("parallel",)),
    )(x, blk["sub_w"], blk["sub_b"], blk["fh_w"], blk["res_w"], blk["bfr"])


# ----------------------------------------------------------------------------
# Fused epilog: K=29 dilated conv+BN+ReLU -> 1x1 conv+BN+ReLU -> 1x1 conv+BN+ReLU
# ----------------------------------------------------------------------------
def _make_epilog_kernel(pad, padA, pad_r, dil, L, L_out, Cin_p, G, NG):
    def kernel(x_ref, w1_ref, b1_ref, w2_ref, b2_ref, w3_ref, b3_ref, o_ref,
               x_buf):
        if padA:
            x_buf[pl.ds(0, padA), :] = jnp.zeros((padA, Cin_p), jnp.bfloat16)
        if pad_r:
            x_buf[pl.ds(padA + L, pad_r), :] = jnp.zeros((pad_r, Cin_p),
                                                         jnp.bfloat16)
        x_buf[pl.ds(padA, L), :] = x_ref[0]

        # K-wide dilated conv + BN + ReLU (grouped-tap accumulation)
        h = _grouped_conv(x_buf, lambda g: w1_ref[g], padA=padA, pad=pad,
                          dil=dil, L_out=L_out, G=G, NG=NG)
        h = jnp.maximum(h + b1_ref[...], 0.0).astype(jnp.bfloat16)
        # two 1x1 conv + BN + ReLU layers fused in VMEM (no HBM round trips)
        h = jnp.dot(h, w2_ref[...], preferred_element_type=jnp.float32)
        h = jnp.maximum(h + b2_ref[...], 0.0).astype(jnp.bfloat16)
        h = jnp.dot(h, w3_ref[...], preferred_element_type=jnp.float32)
        h = jnp.maximum(h + b3_ref[...], 0.0)
        o_ref[0] = h.astype(o_ref.dtype)

    return kernel


def epilog_fused_pallas(x, ep):
    N, L, Cin_p = x.shape
    K, dil, G, NG = ep["K"], ep["dil"], ep["G"], ep["NG"]
    pad = K // 2
    L_out = L + 2 * pad - dil * (K - 1)
    padA = align16(pad)
    pad_r = pad + dil * (NG * G - K)
    Lbuf = padA + L + pad_r
    GC = G * Cin_p
    C1_p = ep["w1"].shape[-1]
    (w2, b2), (w3, b3) = ep["pointwise"]
    C2_p, C3_p = w2.shape[-1], w3.shape[-1]

    kernel = _make_epilog_kernel(pad, padA, pad_r, dil, L, L_out, Cin_p, G, NG)
    return pl.pallas_call(
        kernel,
        out_shape=jax.ShapeDtypeStruct((N, L_out, C3_p), jnp.bfloat16),
        grid=(N,),
        in_specs=[
            pl.BlockSpec((1, L, Cin_p), lambda n: (n, 0, 0)),
            pl.BlockSpec((NG, GC, C1_p), lambda n: (0, 0, 0)),
            pl.BlockSpec((1, C1_p), lambda n: (0, 0)),
            pl.BlockSpec((C1_p, C2_p), lambda n: (0, 0)),
            pl.BlockSpec((1, C2_p), lambda n: (0, 0)),
            pl.BlockSpec((C2_p, C3_p), lambda n: (0, 0)),
            pl.BlockSpec((1, C3_p), lambda n: (0, 0)),
        ],
        out_specs=pl.BlockSpec((1, L_out, C3_p), lambda n: (n, 0, 0)),
        scratch_shapes=[pltpu.VMEM((Lbuf, Cin_p), jnp.bfloat16)],
        compiler_params=pltpu.CompilerParams(dimension_semantics=("parallel",)),
    )(x, ep["w1"], ep["b1"], w2, b2, w3, b3)


# ----------------------------------------------------------------------------
# Parameter construction (deterministic, BN folded into conv)
# ----------------------------------------------------------------------------
def _fold_bn(conv_w, conv_b, gamma, beta, mean, var):
    scale = gamma / jnp.sqrt(var + BN_EPS)
    return conv_w * scale[:, None, None], (conv_b - mean) * scale + beta


def _init_conv_bn(key, cin, cout, k):
    ks = jax.random.split(key, 6)
    w = jax.random.normal(ks[0], (cout, cin, k), jnp.float32) * np.sqrt(2.0 / (cin * k))
    b = 0.01 * jax.random.normal(ks[1], (cout,), jnp.float32)
    gamma = 1.0 + 0.1 * jax.random.normal(ks[2], (cout,), jnp.float32)
    beta = 0.1 * jax.random.normal(ks[3], (cout,), jnp.float32)
    mean = 0.1 * jax.random.normal(ks[4], (cout,), jnp.float32)
    var = 1.0 + 0.1 * jnp.abs(jax.random.normal(ks[5], (cout,), jnp.float32))
    return _fold_bn(w, b, gamma, beta, mean, var)


def build_params(key, cfg):
    keys = iter(jax.random.split(key, 256))
    params = {"prolog": _init_conv_bn(next(keys), cfg["mel"], cfg["in_list"][0], 11)}
    blocks = []
    for i in range(len(cfg["in_list"])):             # stages (block_i_0, block_i_1)
        for j in range(2):
            cin = cfg["in_list"][i] if j == 0 else cfg["out_list"][i]
            cout = cfg["out_list"][i]
            kw = cfg["kw_list"][i]
            blocks.append(dict(
                kw=kw,
                sub=[_init_conv_bn(next(keys), cin, cin, kw) for _ in range(cfg["r"])],
                res=_init_conv_bn(next(keys), cin, cout, 1),
                fh=_init_conv_bn(next(keys), cin, cout, kw),
            ))
    params["blocks"] = blocks
    epi = []
    cin = cfg["out_list"][-1]
    for (cout, k, dil) in cfg["epilog"]:
        epi.append((dil, k, _init_conv_bn(next(keys), cin, cout, k)))
        cin = cout
    params["epilog"] = epi
    return params


def _prep_conv_grouped(w, b, cin_p, cout_p, G):
    """w: (Cout, Cin, K) f32 -> grouped (NG, G*cin_p, cout_p) bf16 + (1, cout_p) f32.
    Taps beyond K and channels beyond real counts are zero (phantom taps/lanes)."""
    Cout, Cin, K = w.shape
    NG = -(-K // G)
    Kp = NG * G
    w_full = jnp.zeros((Kp, cin_p, cout_p), jnp.float32)
    w_full = w_full.at[:K, :Cin, :Cout].set(jnp.transpose(w, (2, 1, 0)))
    w_g = w_full.reshape(NG, G * cin_p, cout_p).astype(jnp.bfloat16)
    b_p = jnp.zeros((1, cout_p), jnp.float32).at[0, :Cout].set(b)
    return w_g, b_p


def _prep_prolog(w, b):
    """Prolog weight over REAL input channels, tap-major im2col layout."""
    Cout, Cin, K = w.shape
    kc, kc_p, cout_p = K * Cin, cpad(K * Cin), cpad(Cout)
    w_r = jnp.transpose(w, (2, 1, 0)).reshape(kc, Cout)
    w_p = jnp.zeros((kc_p, cout_p), jnp.float32).at[:kc, :Cout].set(w_r)
    b_p = jnp.zeros((1, cout_p), jnp.float32).at[0, :Cout].set(b)
    return w_p.astype(jnp.bfloat16), b_p


def prepare_kernel_params(params, G=TAPS_PER_GROUP):
    kp = {}
    w, b = params["prolog"]
    kp["prolog"] = dict(K=w.shape[-1], stride=2, wb=_prep_prolog(w, b))

    kblocks = []
    for blk in params["blocks"]:
        K = blk["kw"]
        NG = -(-K // G)
        cin = blk["sub"][0][0].shape[1]
        cout = blk["fh"][0].shape[0]
        cin_p, cout_p = cpad(cin), cpad(cout)
        subs = [_prep_conv_grouped(sw, sb, cin_p, cin_p, G) for (sw, sb) in blk["sub"]]
        fh_w, fh_b = _prep_conv_grouped(blk["fh"][0], blk["fh"][1], cin_p, cout_p, G)
        res_wg, res_b = _prep_conv_grouped(blk["res"][0], blk["res"][1], cin_p, cout_p, 1)
        kblocks.append(dict(K=K, G=G, NG=NG,
                            sub_w=jnp.stack([s[0] for s in subs]),
                            sub_b=jnp.stack([s[1] for s in subs]),
                            fh_w=fh_w, res_w=res_wg[0], bfr=fh_b + res_b))
    kp["blocks"] = kblocks

    assert len(params["epilog"]) == 3
    (dil0, k0, (w0, b0)) = params["epilog"][0]
    w1g, b1 = _prep_conv_grouped(w0, b0, cpad(w0.shape[1]), cpad(w0.shape[0]), G)
    pointwise = []
    for (dil, k, (wp, bp)) in params["epilog"][1:]:
        assert k == 1 and dil == 1
        wg, bpp = _prep_conv_grouped(wp, bp, cpad(wp.shape[1]), cpad(wp.shape[0]), 1)
        pointwise.append((wg[0], bpp))
    kp["epilog"] = dict(K=k0, dil=dil0, G=G, NG=-(-k0 // G),
                        w1=w1g, b1=b1, pointwise=pointwise)
    return kp


# ----------------------------------------------------------------------------
# Forward passes
# ----------------------------------------------------------------------------
def jasper_forward_pallas(x_nlc, kp):
    """x_nlc: (N, T, n_mels) bf16 (real channels, no lane padding needed)."""
    p = kp["prolog"]
    patches = prolog_im2col(x_nlc, p["K"], p["stride"])          # (N, Lout, K*Cin)
    kc_p = p["wb"][0].shape[0]
    patches = jnp.pad(patches, ((0, 0), (0, 0), (0, kc_p - patches.shape[-1])))
    h = matmul_bias_relu_pallas(patches, *p["wb"])
    for blk in kp["blocks"]:
        h = jasper_block_pallas(h, blk)
    return epilog_fused_pallas(h, kp["epilog"])


# Pure-JAX reference with the same precision policy (bf16 inputs, f32 accumulation)
def conv_bn_ref(x_bf, w, b, *, stride=1, dilation=1):
    pad = w.shape[-1] // 2
    y = lax.conv_general_dilated(
        jnp.transpose(x_bf, (0, 2, 1)), w.astype(jnp.bfloat16),
        window_strides=(stride,), padding=[(pad, pad)], rhs_dilation=(dilation,),
        dimension_numbers=("NCH", "OIH", "NCH"),
        preferred_element_type=jnp.float32)
    return jnp.transpose(y, (0, 2, 1)) + b[None, None, :]


def sub_ref(x_bf, w, b, **kw):
    return jnp.maximum(conv_bn_ref(x_bf, w, b, **kw), 0.0).astype(jnp.bfloat16)


def jasper_forward_ref(x_bf, params):
    w, b = params["prolog"]
    h = sub_ref(x_bf, w, b, stride=2)
    for blk in params["blocks"]:
        h_in = h
        for (sw, sb) in blk["sub"]:
            h = sub_ref(h, sw, sb)
        fh = conv_bn_ref(h, *blk["fh"])
        res = conv_bn_ref(h_in, *blk["res"])
        h = jnp.maximum(fh + res, 0.0).astype(jnp.bfloat16)
    for (dil, k, (w, b)) in params["epilog"]:
        h = sub_ref(h, w, b, dilation=dil)
    return h


if __name__ == "__main__":
    # Scaled-down Jasper config (same structure: stride-2 prolog, 2 JasperBlocks per
    # stage with r sub-blocks + 1x1 residual, dilated-29/1/1 epilog).
    cfg = dict(
        mel=16,                 # n_mels / in_channels
        r=2,                    # sub-blocks per JasperBlock
        in_list=[16, 24],       # per-stage block input channels
        out_list=[24, 32],      # per-stage block output channels
        kw_list=[11, 13],       # per-stage kernel widths
        epilog=[(40, 29, 2), (48, 1, 1), (8, 1, 1)],   # (out_ch, K, dilation)
    )
    key = jax.random.PRNGKey(0)
    kparam_key, kx = jax.random.split(key)
    params = build_params(kparam_key, cfg)
    kparams = prepare_kernel_params(params)

    N, T = 2, 64
    # input: mel-spectrogram in PyTorch NCL layout (N, n_mels, T)
    x_ncl = jax.random.normal(kx, (N, cfg["mel"], T), jnp.float32)
    x_nlc = jnp.transpose(x_ncl, (0, 2, 1)).astype(jnp.bfloat16)

    y_pal = jax.block_until_ready(jasper_forward_pallas(x_nlc, kparams))

    cout_final = cfg["epilog"][-1][0]
    y_pal_ncl = jnp.transpose(y_pal[:, :, :cout_final], (0, 2, 1)).astype(jnp.float32)

    y_ref = jasper_forward_ref(x_nlc, params)
    y_ref_ncl = jnp.transpose(y_ref, (0, 2, 1)).astype(jnp.float32)

    # output: (N, out_channels, Lout) with Lout = T//2 - 28 (dilated epilog conv)
    assert y_pal_ncl.shape == (N, cout_final, T // 2 - 28), y_pal_ncl.shape
    np.testing.assert_allclose(np.asarray(y_pal_ncl), np.asarray(y_ref_ncl),
                               rtol=2e-2, atol=2e-3)
    print("KERNEL_OK")
</pallas_src>

<mosaic_0001>
module attributes {stable_mosaic.version = 11 : i64} {
  func.func @_prolog_kernel(%arg0: i32, %arg1: memref<1x32x256xbf16, #tpu.memory_space<vmem>>, %arg2: memref<256x128xbf16, #tpu.memory_space<vmem>>, %arg3: memref<1x128xf32, #tpu.memory_space<vmem>>, %arg4: memref<1x32x128xbf16, #tpu.memory_space<vmem>>) attributes {dimension_semantics = [#tpu.dimension_semantics<parallel>], iteration_bounds = array<i64: 2>, scalar_prefetch = 0 : i64, scratch_operands = 0 : i64, tpu.core_type = #tpu.core_type<tc>, window_params = [{transform_indices = @transform_0, window_bounds = array<i64: 1, 32, 256>}, {pipeline_mode = #tpu.pipeline_mode<synchronous>, transform_indices = @transform_1, window_bounds = array<i64: 256, 128>}, {pipeline_mode = #tpu.pipeline_mode<synchronous>, transform_indices = @transform_2, window_bounds = array<i64: 1, 128>}, {transform_indices = @transform_3, window_bounds = array<i64: 1, 32, 128>}]} {
    %c0 = arith.constant 0 : index
    %c0_0 = arith.constant 0 : index
    %c0_1 = arith.constant 0 : index
    %0 = vector.load %arg1[%c0, %c0_0, %c0_1] : memref<1x32x256xbf16, #tpu.memory_space<vmem>>, vector<1x32x256xbf16>
    %1 = vector.shape_cast %0 : vector<1x32x256xbf16> to vector<32x256xbf16>
    %c0_2 = arith.constant 0 : index
    %c0_3 = arith.constant 0 : index
    %2 = vector.load %arg2[%c0_2, %c0_3] : memref<256x128xbf16, #tpu.memory_space<vmem>>, vector<256x128xbf16>
    %cst = arith.constant dense<0.000000e+00> : vector<32x128xf32>
    %3 = tpu.matmul %1, %2, %cst {dimension_numbers = #tpu.dot_dimension_numbers<[1], [0], [0], [1], [0, 0, 1, 1], [], []>} : vector<32x256xbf16>, vector<256x128xbf16>, vector<32x128xf32> -> vector<32x128xf32>
    %c0_4 = arith.constant 0 : index
    %c0_5 = arith.constant 0 : index
    %4 = vector.load %arg3[%c0_4, %c0_5] : memref<1x128xf32, #tpu.memory_space<vmem>>, vector<1x128xf32>
    %5 = vector.broadcast %4 : vector<1x128xf32> to vector<32x128xf32>
    %6 = arith.addf %3, %5 : vector<32x128xf32>
    %cst_6 = arith.constant 0.000000e+00 : f32
    %7 = vector.broadcast %cst_6 : f32 to vector<32x128xf32>
    %8 = arith.maximumf %6, %7 : vector<32x128xf32>
    %9 = arith.truncf %8 : vector<32x128xf32> to vector<32x128xbf16>
    %c0_7 = arith.constant 0 : index
    %c0_8 = arith.constant 0 : index
    %c0_9 = arith.constant 0 : index
    %10 = vector.load %arg4[%c0_7, %c0_8, %c0_9] : memref<1x32x128xbf16, #tpu.memory_space<vmem>>, vector<1x32x128xbf16>
    %11 = vector.shape_cast %10 : vector<1x32x128xbf16> to vector<32x128xbf16>
    %12 = vector.shape_cast %9 : vector<32x128xbf16> to vector<1x32x128xbf16>
    tpu.vector_store %arg4[%c0_7, %c0_8, %c0_9], %12 {strides = array<i32>} : memref<1x32x128xbf16, #tpu.memory_space<vmem>>, vector<1x32x128xbf16>,
    return
  }
  func.func @transform_0(%arg0: i32) -> (i32, i32, i32) {
    %c0_i32 = arith.constant 0 : i32
    %c0_i32_0 = arith.constant 0 : i32
    %c0_i32_1 = arith.constant 0 : i32
    return %arg0, %c0_i32, %c0_i32_0 : i32, i32, i32
  }
  func.func @transform_1(%arg0: i32) -> (i32, i32) {
    %c0_i32 = arith.constant 0 : i32
    %c0_i32_0 = arith.constant 0 : i32
    %c0_i32_1 = arith.constant 0 : i32
    return %c0_i32, %c0_i32_0 : i32, i32
  }
  func.func @transform_2(%arg0: i32) -> (i32, i32) {
    %c0_i32 = arith.constant 0 : i32
    %c0_i32_0 = arith.constant 0 : i32
    %c0_i32_1 = arith.constant 0 : i32
    return %c0_i32, %c0_i32_0 : i32, i32
  }
  func.func @transform_3(%arg0: i32) -> (i32, i32, i32) {
    %c0_i32 = arith.constant 0 : i32
    %c0_i32_0 = arith.constant 0 : i32
    %c0_i32_1 = arith.constant 0 : i32
    return %arg0, %c0_i32, %c0_i32_0 : i32, i32, i32
  }
}

</mosaic_0001>

<llo_original>
// kernel: tpu_custom_call.1
$region0: #{tpu_custom_call.1}
  #allocation0 [shape = 'u32[]', space=smem, size = 0x4, offset = 0x4, fixed_abs, tag = 'smem constant byte address 0x4 - core index']
  #allocation1 [shape = 'u32[144,128]{1,0:T(1,128)}', space=vmem, size = 0x12000, scoped, tag = 'internal scratch']
  %s0 = inlined_call_operand.hbm [shape: bf16[2,32,256], index: 0, kind: input, shape index: {}]
  %s1 = inlined_call_operand.hbm [shape: bf16[256,128], index: 1, kind: input, shape index: {}]
  %s2 = inlined_call_operand.vmem [shape: f32[1,128], index: 2, kind: input, shape index: {}]
  %s3 = inlined_call_operand.hbm [shape: bf16[2,32,128], index: 3, kind: output, shape index: {}]
  %s4 = sld [smem:[#allocation0]]
  $region53: #{tpu_custom_call.1} parent=0
    _
  %s6 = ssub.s32 1, %s4
  %s7 = scalar_select 0, %s6, %s4
  $region1: #{tpu_custom_call.1} parent=0
    #allocation2 [shape = 'u8[32768]{0}', space=vmem, size = 0x8000, scoped, tag = 'input window, operand 0']
    #allocation3 [shape = 's32[2]{0}', space=sflag, size = 0x8, scoped, tag = 'scoped memory for tpu_custom_call.1']
    #allocation4 [shape = 's32[2]{0}', space=sflag, size = 0x8, scoped, tag = 'scoped memory for tpu_custom_call.1']
    #allocation5 [shape = 'u8[65536]{0}', space=vmem, size = 0x10000, scoped, tag = 'input window, operand 1, single buffered']
    #allocation6 [shape = 's32[1]{0}', space=sflag, size = 0x4, scoped, tag = 'scoped memory for tpu_custom_call.1']
    #allocation7 [shape = 'u8[16384]{0}', space=vmem, size = 0x4000, scoped, tag = 'output window, operand 0']
    %8 = vsyncpa [#allocation3], 0
    %s9 = scalar_lea.sflag [#allocation3], 1
    %10 = vsyncpa %s9, 0
    %11 = vsyncpa [#allocation6], 0
    %12 = vsyncpa [#allocation4], 0
    %s13 = scalar_lea.sflag [#allocation4], 1
    %14 = vsyncpa %s13, 0
    loop: start=0, step=1, limit=4
    $region2: #{tpu_custom_call.1} parent=1 // loop_pre_header
      _
    $region3: #{tpu_custom_call.1} parent=1 // loop_header
      %s16 = sphi 0, %s20
      %p17 = scmp.ge.s32.totalorder %s16, 4
      %s26 = sphi 0, %s28
      %s29 = sphi 0, %s26
      %s30 = sphi 0, %s29
      %s46 = sphi 0, %s30
      %s50 = sphi 0, %s50
      %s52 = sphi 0, %s50
      %s53 = sphi 0, %s52
      %s67 = sphi 0, %s53
      %s71 = sphi 0, %s71
      %s73 = sphi 0, %s71
      %s74 = sphi 0, %s73
      %s88 = sphi 0, %s74
      %s94 = sphi 0, %s96
      %s97 = sphi 0, %s94
      %s98 = sphi 0, %s97
      %s114 = sphi 0, %s98
    $region4: #{tpu_custom_call.1} parent=1 // loop_header_branch
      %19 = sbr.rel (%p17) target = $region8
    $region5: #{tpu_custom_call.1} parent=1 // loop_body
      %s21 = ssub.s32 %s16, 1
      %s22 = ssub.s32 %s16, 2
      %s23 = sadd.s32 %s16, 1
      %s24 = ssub.s32 %s16, %s23
      %p25 = scmp.eq.s32.totalorder %s24, 0
      %s27 = sadd.s32 %s26, 1
      %s28 = scalar_select %p25, %s26, %s27
      %p31 = pneg %p25
      %p32 = scmp.eq.s32.totalorder %s16, 1
      %p33 = por %p31, %p32
      %p34 = scmp.ne.s32.totalorder %s26, %s29
      %p35 = scmp.eq.s32.totalorder %s16, 0
      %p36 = por %p34, %p35
      %p37 = scmp.ne.s32.totalorder %s26, %s29
      %p38 = scmp.eq.s32.totalorder %s21, 1
      %p39 = por %p37, %p38
      %p40 = scmp.ne.s32.totalorder %s29, %s30
      %p41 = scmp.eq.s32.totalorder %s21, 0
      %p42 = por %p40, %p41
      %p43 = scmp.ne.s32.totalorder %s29, %s30
      %p44 = scmp.eq.s32.totalorder %s22, 1
      %p45 = por %p43, %p44
      %p47 = scmp.ne.s32.totalorder %s30, %s46
      %p48 = scmp.eq.s32.totalorder %s22, 0
      %p49 = por %p47, %p48
      %s51 = sadd.s32 %s50, 1
      %p54 = scmp.eq.s32.totalorder %s16, 1
      %p55 = scmp.ne.s32.totalorder %s50, %s52
      %p56 = scmp.eq.s32.totalorder %s16, 0
      %p57 = por %p55, %p56
      %p58 = scmp.ne.s32.totalorder %s50, %s52
      %p59 = scmp.eq.s32.totalorder %s21, 1
      %p60 = por %p58, %p59
      %p61 = scmp.ne.s32.totalorder %s52, %s53
      %p62 = scmp.eq.s32.totalorder %s21, 0
      %p63 = por %p61, %p62
      %p64 = scmp.ne.s32.totalorder %s52, %s53
      %p65 = scmp.eq.s32.totalorder %s22, 1
      %p66 = por %p64, %p65
      %p68 = scmp.ne.s32.totalorder %s53, %s67
      %p69 = scmp.eq.s32.totalorder %s22, 0
      %p70 = por %p68, %p69
      %s72 = sadd.s32 %s71, 1
      %p75 = scmp.eq.s32.totalorder %s16, 1
      %p76 = scmp.ne.s32.totalorder %s71, %s73
      %p77 = scmp.eq.s32.totalorder %s16, 0
      %p78 = por %p76, %p77
      %p79 = scmp.ne.s32.totalorder %s71, %s73
      %p80 = scmp.eq.s32.totalorder %s21, 1
      %p81 = por %p79, %p80
      %p82 = scmp.ne.s32.totalorder %s73, %s74
      %p83 = scmp.eq.s32.totalorder %s21, 0
      %p84 = por %p82, %p83
      %p85 = scmp.ne.s32.totalorder %s73, %s74
      %p86 = scmp.eq.s32.totalorder %s22, 1
      %p87 = por %p85, %p86
      %p89 = scmp.ne.s32.totalorder %s74, %s88
      %p90 = scmp.eq.s32.totalorder %s22, 0
      %p91 = por %p89, %p90
      %s92 = ssub.s32 %s16, %s23
      %p93 = scmp.eq.s32.totalorder %s92, 0
      %s95 = sadd.s32 %s94, 1
      %s96 = scalar_select %p93, %s94, %s95
      %p99 = pneg %p93
      %p100 = scmp.eq.s32.totalorder %s16, 1
      %p101 = por %p99, %p100
      %p102 = scmp.ne.s32.totalorder %s94, %s97
      %p103 = scmp.eq.s32.totalorder %s16, 0
      %p104 = por %p102, %p103
      %p105 = scmp.ne.s32.totalorder %s94, %s97
      %p106 = scmp.eq.s32.totalorder %s21, 1
      %p107 = por %p105, %p106
      %p108 = scmp.ne.s32.totalorder %s97, %s98
      %p109 = scmp.eq.s32.totalorder %s21, 0
      %p110 = por %p108, %p109
      %p111 = scmp.ne.s32.totalorder %s97, %s98
      %p112 = scmp.eq.s32.totalorder %s22, 1
      %p113 = por %p111, %p112
      %p115 = scmp.ne.s32.totalorder %s98, %s114
      %p116 = scmp.eq.s32.totalorder %s22, 0
      %p117 = por %p115, %p116
      %p118 = scmp.le.s32.totalorder 1, %s16
      %p119 = scmp.lt.s32.totalorder %s16, 3
      %p120 = pnand %p118, %p119
      %p121 = pneg %p120
      // Predicated region
      $region9: #{tpu_custom_call.1} parent=5 // pred_check
        _
      $region10: #{tpu_custom_call.1} parent=5 // pred_check_branch
        %123 = sbr.rel (%p120) target = $region12
      $region11: #{tpu_custom_call.1} parent=5 // pred_region
        %s124 = ssub.s32 %s16, 1
        // Predicated region
        $region13: #{tpu_custom_call.1} parent=11 // pred_check
          %p125 = pneg %p63
        $region14: #{tpu_custom_call.1} parent=11 // pred_check_branch
          %127 = sbr.rel (%p125) target = $region16
        $region15: #{tpu_custom_call.1} parent=11 // pred_region
          %s129 = ssub.s32 2048, 2048
          %130 = vsyncadd [#allocation6], %s129
          %s131 = sshll.u32 [#allocation5], 4
          %s132 = int_to_ptr.vmem [resolvable:$true] %s131
          %137 = dma.hbm_to_vmem [thread:$0]  %s1, 2048, %s132, [#allocation6], 64, 64, 4
        $region16: #{tpu_custom_call.1} parent=11 // pred_fallthru
          _
        // Predicated region
        $region17: #{tpu_custom_call.1} parent=11 // pred_check
          %p138 = pneg %p84
        $region18: #{tpu_custom_call.1} parent=11 // pred_check_branch
          %140 = sbr.rel (%p138) target = $region20
        $region19: #{tpu_custom_call.1} parent=11 // pred_region
          _
        $region20: #{tpu_custom_call.1} parent=11 // pred_fallthru
          _
      $region12: #{tpu_custom_call.1} parent=5 // pred_fallthru
        _
      %p141 = scmp.lt.s32.totalorder %s16, 2
      // Predicated region
      $region21: #{tpu_custom_call.1} parent=5 // pred_check
        %p142 = pneg %p141
      $region22: #{tpu_custom_call.1} parent=5 // pred_check_branch
        %144 = sbr.rel (%p142) target = $region24
      $region23: #{tpu_custom_call.1} parent=5 // pred_region
        // Predicated region
        $region25: #{tpu_custom_call.1} parent=23 // pred_check
          %p145 = pneg %p36
        $region26: #{tpu_custom_call.1} parent=23 // pred_check_branch
          %147 = sbr.rel (%p145) target = $region28
        $region27: #{tpu_custom_call.1} parent=23 // pred_region
          %s148 = sand.u32 %s26, 1
          %s149 = scalar_lea.sflag [#allocation3], %s148
          %s150 = sand.u32 %s26, 1
          %s151 = smul.addr %s150, 32
          %s152 = scalar_lea.vmem [#allocation2], %s151
          %s154 = ssub.s32 512, 512
          %155 = vsyncadd %s149, %s154
          %s156 = smul.addr %s16, 8
          %s157 = smul.addr %s156, 64
          %s158 = scalar_lea.hbm %s0, %s157
          %s159 = sshll.u32 %s152, 4
          %s160 = int_to_ptr.vmem [resolvable:$true] %s159
          %165 = dma.hbm_to_vmem [thread:$0]  %s158, 512, %s160, %s149, 128, 128, 8
        $region28: #{tpu_custom_call.1} parent=23 // pred_fallthru
          _
      $region24: #{tpu_custom_call.1} parent=5 // pred_fallthru
        _
      %p166 = scmp.le.s32.totalorder 1, %s16
      %p167 = scmp.lt.s32.totalorder %s16, 3
      %p168 = pnand %p166, %p167
      %p169 = pneg %p168
      // Predicated region
      $region29: #{tpu_custom_call.1} parent=5 // pred_check
        _
      $region30: #{tpu_custom_call.1} parent=5 // pred_check_branch
        %171 = sbr.rel (%p168) target = $region32
      $region31: #{tpu_custom_call.1} parent=5 // pred_region
        %s172 = ssub.s32 %s16, 1
        %s173 = sand.u32 %s29, 1
        %s174 = scalar_lea.sflag [#allocation3], %s173
        %s175 = sand.u32 %s29, 1
        %s176 = smul.addr %s175, 32
        %s177 = scalar_lea.vmem [#allocation2], %s176
        // Predicated region
        $region33: #{tpu_custom_call.1} parent=31 // pred_check
          %p178 = pneg %p42
        $region34: #{tpu_custom_call.1} parent=31 // pred_check_branch
          %180 = sbr.rel (%p178) target = $region36
        $region35: #{tpu_custom_call.1} parent=31 // pred_region
          %181 = dma.done %s174, 512
        $region36: #{tpu_custom_call.1} parent=31 // pred_fallthru
          _
        // Predicated region
        $region37: #{tpu_custom_call.1} parent=31 // pred_check
          %p182 = pneg %p63
        $region38: #{tpu_custom_call.1} parent=31 // pred_check_branch
          %184 = sbr.rel (%p182) target = $region40
        $region39: #{tpu_custom_call.1} parent=31 // pred_region
          %185 = dma.done [#allocation6], 2048
        $region40: #{tpu_custom_call.1} parent=31 // pred_fallthru
          _
        %s186 = sand.u32 %s29, 1
        %s187 = scalar_lea.sflag [#allocation3], %s186
        %s188 = sand.u32 %s29, 1
        %s189 = smul.addr %s188, 32
        %s190 = scalar_lea.vmem [#allocation2], %s189
        %p191 = pneg %p42
        %p192 = pneg %p39
        %p193 = pneg %p63
        %p194 = pneg %p60
        %p195 = pneg %p84
        %p196 = pneg %p81
        %p197 = pneg %p110
        %p198 = pneg %p107
        %s199 = sand.u32 %s97, 1
        %s200 = scalar_lea.sflag [#allocation4], %s199
        %s201 = sand.u32 %s97, 1
        %s202 = smul.addr %s201, 16
        %s203 = scalar_lea.vmem [#allocation7], %s202
        %v205 = vld [vmem:[%s177] sm:$0xff]
        %v206 = vld [vmem:[%s177 + $0x8] sm:$0xff]
        %v207 = vld [vmem:[%s177 + $0x10] sm:$0xff]
        %v208 = vld [vmem:[%s177 + $0x18] sm:$0xff]
        %v209 = vld [vmem:[#allocation5] sm:$0xf]
        %v210 = vld [vmem:[#allocation5 + $0x4] sm:$0xf]
        %v211 = vld [vmem:[#allocation5 + $0x8] sm:$0xf]
        %v212 = vld [vmem:[#allocation5 + $0xc] sm:$0xf]
        %v213 = vld [vmem:[#allocation5 + $0x10] sm:$0xf]
        %v214 = vld [vmem:[#allocation5 + $0x14] sm:$0xf]
        %v215 = vld [vmem:[#allocation5 + $0x18] sm:$0xf]
        %v216 = vld [vmem:[#allocation5 + $0x1c] sm:$0xf]
        %v217 = vld [vmem:[#allocation5 + $0x20] sm:$0xf]
        %v218 = vld [vmem:[#allocation5 + $0x24] sm:$0xf]
        %v219 = vld [vmem:[#allocation5 + $0x28] sm:$0xf]
        %v220 = vld [vmem:[#allocation5 + $0x2c] sm:$0xf]
        %v221 = vld [vmem:[#allocation5 + $0x30] sm:$0xf]
        %v222 = vld [vmem:[#allocation5 + $0x34] sm:$0xf]
        %v223 = vld [vmem:[#allocation5 + $0x38] sm:$0xf]
        %v224 = vld [vmem:[#allocation5 + $0x3c] sm:$0xf]
        %v225 = vld [vmem:[#allocation5 + $0x40] sm:$0xf]
        %v226 = vld [vmem:[#allocation5 + $0x44] sm:$0xf]
        %v227 = vld [vmem:[#allocation5 + $0x48] sm:$0xf]
        %v228 = vld [vmem:[#allocation5 + $0x4c] sm:$0xf]
        %v229 = vld [vmem:[#allocation5 + $0x50] sm:$0xf]
        %v230 = vld [vmem:[#allocation5 + $0x54] sm:$0xf]
        %v231 = vld [vmem:[#allocation5 + $0x58] sm:$0xf]
        %v232 = vld [vmem:[#allocation5 + $0x5c] sm:$0xf]
        %v233 = vld [vmem:[#allocation5 + $0x60] sm:$0xf]
        %v234 = vld [vmem:[#allocation5 + $0x64] sm:$0xf]
        %v235 = vld [vmem:[#allocation5 + $0x68] sm:$0xf]
        %v236 = vld [vmem:[#allocation5 + $0x6c] sm:$0xf]
        %v237 = vld [vmem:[#allocation5 + $0x70] sm:$0xf]
        %v238 = vld [vmem:[#allocation5 + $0x74] sm:$0xf]
        %v239 = vld [vmem:[#allocation5 + $0x78] sm:$0xf]
        %v240 = vld [vmem:[#allocation5 + $0x7c] sm:$0xf]
        %v241 = vld [vmem:[%s2] sm:$0x1]
        %v243 = vlaneseq
        %v244 = vshrl.u32 %v243, 7
        %v245 = vsub.s32 0, %v244
        %v246 = vrot.slane %v241, %v245
        %v252 = vunpack.c.l.b16 %v205
        %v253 = vunpack.c.h.b16 %v205
        %v254 = vunpack.c.l.b16 %v206
        %v255 = vunpack.c.h.b16 %v206
        %v256 = vunpack.c.l.b16 %v207
        %v257 = vunpack.c.h.b16 %v207
        %v258 = vunpack.c.l.b16 %v208
        %v259 = vunpack.c.h.b16 %v208
        %v260 = vpack.c.b16 %v254, %v252
        %v261 = vpack.c.b16 %v255, %v253
        %v262 = vpack.c.b16 %v258, %v256
        %v263 = vpack.c.b16 %v259, %v257
        %v300 = vunpack.c.l.b16 %v209
        %v301 = vunpack.c.l.b16 %v210
        %v302 = vunpack.c.l.b16 %v211
        %v303 = vunpack.c.l.b16 %v212
        %v304 = vunpack.c.l.b16 %v213
        %v305 = vunpack.c.l.b16 %v214
        %v306 = vunpack.c.l.b16 %v215
        %v307 = vunpack.c.l.b16 %v216
        %v308 = vunpack.c.l.b16 %v217
        %v309 = vunpack.c.l.b16 %v218
        %v310 = vunpack.c.l.b16 %v219
        %v311 = vunpack.c.l.b16 %v220
        %v312 = vunpack.c.l.b16 %v221
        %v313 = vunpack.c.l.b16 %v222
        %v314 = vunpack.c.l.b16 %v223
        %v315 = vunpack.c.l.b16 %v224
        %v316 = vunpack.c.l.b16 %v225
        %v317 = vunpack.c.l.b16 %v226
        %v318 = vunpack.c.l.b16 %v227
        %v319 = vunpack.c.l.b16 %v228
        %v320 = vunpack.c.l.b16 %v229
        %v321 = vunpack.c.l.b16 %v230
        %v322 = vunpack.c.l.b16 %v231
        %v323 = vunpack.c.l.b16 %v232
        %v324 = vunpack.c.l.b16 %v233
        %v325 = vunpack.c.l.b16 %v234
        %v326 = vunpack.c.l.b16 %v235
        %v327 = vunpack.c.l.b16 %v236
        %v328 = vunpack.c.l.b16 %v237
        %v329 = vunpack.c.l.b16 %v238
        %v330 = vunpack.c.l.b16 %v239
        %v331 = vunpack.c.l.b16 %v240
        %v332 = vpack.c.b16 %v301, %v300
        %v333 = vpack.c.b16 %v303, %v302
        %v334 = vpack.c.b16 %v305, %v304
        %v335 = vpack.c.b16 %v307, %v306
        %v336 = vpack.c.b16 %v309, %v308
        %v337 = vpack.c.b16 %v311, %v310
        %v338 = vpack.c.b16 %v313, %v312
        %v339 = vpack.c.b16 %v315, %v314
        %v340 = vpack.c.b16 %v317, %v316
        %v341 = vpack.c.b16 %v319, %v318
        %v342 = vpack.c.b16 %v321, %v320
        %v343 = vpack.c.b16 %v323, %v322
        %v344 = vpack.c.b16 %v325, %v324
        %v345 = vpack.c.b16 %v327, %v326
        %v346 = vpack.c.b16 %v329, %v328
        %v347 = vpack.c.b16 %v331, %v330
        %364 = vmatprep.subr.bf16.mxu0 0
        %365 = vmatpush1.bf16.msra.mxu0 %v339
        %366 = vmatprep.subr.bf16.mxu0 0
        %367 = vmatpush1.bf16.msra.mxu0 %v338
        %368 = vmatprep.subr.bf16.mxu0 0
        %369 = vmatpush1.bf16.msra.mxu0 %v337
        %370 = vmatprep.subr.bf16.mxu0 0
        %371 = vmatpush1.bf16.msra.mxu0 %v336
        %372 = vmatprep.subr.bf16.mxu0 0
        %373 = vmatpush1.bf16.msra.mxu0 %v335
        %374 = vmatprep.subr.bf16.mxu0 0
        %375 = vmatpush1.bf16.msra.mxu0 %v334
        %376 = vmatprep.subr.bf16.mxu0 0
        %377 = vmatpush1.bf16.msra.mxu0 %v333
        %378 = vmatprep.subr.bf16.mxu0 0
        %379 = vmatpush1.bf16.msra.mxu0 %v332
        %380 = vmatprep.subr.bf16.mxu0 0
        %381 = vmatpush2.bf16.msra.mxu0 %v347
        %382 = vmatprep.subr.bf16.mxu0 0
        %383 = vmatpush2.bf16.msra.mxu0 %v346
        %384 = vmatprep.subr.bf16.mxu0 0
        %385 = vmatpush2.bf16.msra.mxu0 %v345
        %386 = vmatprep.subr.bf16.mxu0 0
        %387 = vmatpush2.bf16.msra.mxu0 %v344
        %388 = vmatprep.subr.bf16.mxu0 0
        %389 = vmatpush2.bf16.msra.mxu0 %v343
        %390 = vmatprep.subr.bf16.mxu0 0
        %391 = vmatpush2.bf16.msra.mxu0 %v342
        %392 = vmatprep.subr.bf16.mxu0 0
        %393 = vmatpush2.bf16.msra.mxu0 %v341
        %394 = vmatprep.subr.bf16.mxu0 0
        %395 = vmatpush2.bf16.msra.mxu0 %v340
        %396 = vmatprep.mubr.bf16.mxu0 %v261
        %397 = vmatmul.mubr.bf16.gmra.mxu0 %v260
        %v398 = vpop.f32.mrf.mxu0
        %v399 = vadd.f32 %v246, %v398
        %v400 = vpop.f32.mrf.mxu0
        %v401 = vpop.f32.mrf.mxu0
        %v402 = vadd.f32 %v246, %v401
        %v403 = vpop.f32.mrf.mxu0
        %404 = vmatprep.mubr.bf16.mxu0 %v263
        %405 = vmatmul.mubr.bf16.gmra.mxu0 %v262
        %v406 = vpop.f32.mrf.mxu0
        %v407 = vadd.f32 %v246, %v406
        %v408 = vpop.f32.mrf.mxu0
        %v409 = vpop.f32.mrf.mxu0
        %v410 = vadd.f32 %v246, %v409
        %v411 = vpop.f32.mrf.mxu0
        %412 = vdwg.mxu0
        %v413 = vmax.f32 %v399, 0.0
        %v414 = vmax.f32 %v402, 0.0
        %v415 = vmax.f32 %v407, 0.0
        %v416 = vmax.f32 %v410, 0.0
        %v417 = vpack.c.bf16 %v414, %v413
        %v418 = vpack.c.bf16 %v416, %v415
        %v421 = vunpack.c.l.b16 %v417
        %v422 = vunpack.c.h.b16 %v417
        %v423 = vunpack.c.l.b16 %v418
        %v424 = vunpack.c.h.b16 %v418
        %v425 = vpack.c.b16 %v421, %v421
        %v426 = vpack.c.b16 %v422, %v422
        %v427 = vpack.c.b16 %v423, %v423
        %v428 = vpack.c.b16 %v424, %v424
        %433 = vst [vmem:[%s203] sm:$0xf] %v425
        %434 = vst [vmem:[%s203 + $0x4] sm:$0xf] %v426
        %435 = vst [vmem:[%s203 + $0x8] sm:$0xf] %v427
        %436 = vst [vmem:[%s203 + $0xc] sm:$0xf] %v428
        %s437 = sand.u32 %s97, 1
        %s438 = scalar_lea.sflag [#allocation4], %s437
        %s439 = sand.u32 %s97, 1
        %s440 = smul.addr %s439, 16
        %s441 = scalar_lea.vmem [#allocation7], %s440
        // Predicated region
        $region41: #{tpu_custom_call.1} parent=31 // pred_check
          %p442 = pneg %p107
        $region42: #{tpu_custom_call.1} parent=31 // pred_check_branch
          %444 = sbr.rel (%p442) target = $region44
        $region43: #{tpu_custom_call.1} parent=31 // pred_region
          %s446 = ssub.s32 256, 256
          %447 = vsyncadd %s438, %s446
          %s448 = smul.addr %s21, 4
          %s449 = smul.addr %s448, 64
          %s450 = scalar_lea.hbm %s3, %s449
          %s451 = sshll.u32 %s441, 4
          %s452 = int_to_ptr.vmem [resolvable:$true] %s451
          %457 = dma.vmem_to_hbm [thread:$0]  %s452, 256, %s450, %s438, 64, 64, 4
        $region44: #{tpu_custom_call.1} parent=31 // pred_fallthru
          _
      $region32: #{tpu_custom_call.1} parent=5 // pred_fallthru
        _
      %p458 = scmp.le.s32.totalorder 2, %s16
      // Predicated region
      $region45: #{tpu_custom_call.1} parent=5 // pred_check
        %p459 = pneg %p458
      $region46: #{tpu_custom_call.1} parent=5 // pred_check_branch
        %461 = sbr.rel (%p459) target = $region48
      $region47: #{tpu_custom_call.1} parent=5 // pred_region
        %s462 = ssub.s32 %s16, 2
        // Predicated region
        $region49: #{tpu_custom_call.1} parent=47 // pred_check
          %p463 = pneg %p113
        $region50: #{tpu_custom_call.1} parent=47 // pred_check_branch
          %465 = sbr.rel (%p463) target = $region52
        $region51: #{tpu_custom_call.1} parent=47 // pred_region
          %s466 = sand.u32 %s98, 1
          %s467 = scalar_lea.sflag [#allocation4], %s466
          %s468 = sand.u32 %s98, 1
          %s469 = smul.addr %s468, 16
          %s470 = scalar_lea.vmem [#allocation7], %s469
          %471 = dma.done %s467, 256
        $region52: #{tpu_custom_call.1} parent=47 // pred_fallthru
          _
      $region48: #{tpu_custom_call.1} parent=5 // pred_fallthru
        _
    $region6: #{tpu_custom_call.1} parent=1 // loop_footer
      %s20 = sadd.s32 1, %s16
    $region7: #{tpu_custom_call.1} parent=1 // loop_footer_branch
      %15 = sbr.rel target = $region3
    $region8: #{tpu_custom_call.1} parent=1 // loop_exit
      _
    %472 = vsyncpa [#allocation3], 1
    %s473 = scalar_lea.sflag [#allocation3], 1
    %474 = vsyncpa %s473, 1
    %475 = vsyncpa [#allocation6], 1
    %476 = vsyncpa [#allocation4], 1
    %s477 = scalar_lea.sflag [#allocation4], 1
    %478 = vsyncpa %s477, 1

</llo_original>
